<compile_context>
chip_gen: v6e
topology: v6e:2x2x1
jax: 0.10.0
libtpu: 0.0.40
codegen_flags: <defaults>
</compile_context>

<pallas_src>
import functools

import jax
import jax.numpy as jnp
from jax.experimental import pallas as pl
from jax.experimental.pallas import tpu as pltpu

_LANES = 128                 # one f32 vreg row
_GATE_LANES = 3 * _LANES     # [r | z | n], each a full 128-lane block
_GI_LANES = 4 * _LANES       # [r | z | n | b_hn]


def _gru_pi_kernel(xs_ref, st_ref, h0_ref,
                   wih_ref, whh_ref, wps_ref, wph_ref,
                   logits_ref, hout_ref, h_scr, *, state_size):
    """One grid step = one GRU timestep fused with the `pi` head.

    xs_ref     : (T, 3)        SMEM   GRU inputs s_ (whole trajectory, scalar reads)
    st_ref     : (T, S)        SMEM   `state` inputs
    h0_ref     : (1, 128)      VMEM   initial hidden state, zero-padded past H
    wih_ref    : (4, 512)      VMEM   rows 0..2: W_ih^T per 128-lane gate block;
                                      row 3: [b_ir+b_hr | b_iz+b_hz | b_in | b_hn]
    whh_ref    : (128, 384)    VMEM   W_hh^T, gates at lane offsets 0/128/256
    wps_ref    : (S+1, 128)    VMEM   pi weights on `state` (cols 0..2) + bias row S
    wph_ref    : (128, 128)    VMEM   pi weights on h (rows 0..H-1, cols 0..2)
    logits_ref : (1, 1, 128)   VMEM   per-step logits (lanes [0,3)), t-indexed block
    hout_ref   : (1, 128)      VMEM   resident block, ends up holding final h
    h_scr      : (1, 128)      VMEM   f32 hidden-state carry across grid steps
    """
    t = pl.program_id(0)

    @pl.when(t == 0)
    def _():
        h_scr[...] = h0_ref[...]

    h = h_scr[...]                                              # (1, 128) f32

    # ---- GRU gate pre-activations, whole-vreg gate blocks ----
    # Input side (K=3): bias row + three scalar-broadcast FMAs (x scalars in SMEM).
    gi = wih_ref[3:4, :]
    gi = gi + xs_ref[t, 0] * wih_ref[0:1, :]
    gi = gi + xs_ref[t, 1] * wih_ref[1:2, :]
    gi = gi + xs_ref[t, 2] * wih_ref[2:3, :]                    # (1, 512)

    # Hidden side: one lane-dense MXU matmul.
    gh = jnp.dot(h, whh_ref[...], preferred_element_type=jnp.float32)  # (1, 384)

    r = jax.nn.sigmoid(gi[:, 0:128] + gh[:, 0:128])
    z = jax.nn.sigmoid(gi[:, 128:256] + gh[:, 128:256])
    n = jnp.tanh(gi[:, 256:384] + r * (gh[:, 256:384] + gi[:, 384:512]))
    h_new = (1.0 - z) * n + z * h                               # pad lanes stay 0

    h_scr[...] = h_new
    hout_ref[...] = h_new

    # ---- policy head: logits = [state | h_new] @ W_pi^T + b_pi ----
    acc = wps_ref[state_size:state_size + 1, :]                 # bias row (1, 128)
    for k in range(state_size):
        acc = acc + st_ref[t, k] * wps_ref[k:k + 1, :]
    acc = acc + jnp.dot(h_new, wph_ref[...], preferred_element_type=jnp.float32)

    logits_ref[...] = acc.reshape(1, 1, _LANES)


@functools.partial(jax.jit, static_argnames=("state_size", "hidden_size"))
def _rollout_call(xs, states, h0_pad, wih_b, whh_p, wps_b, wph_p,
                  *, state_size, hidden_size):
    S, H = state_size, hidden_size
    T = xs.shape[0]

    kernel = functools.partial(_gru_pi_kernel, state_size=S)

    smem = pl.BlockSpec(memory_space=pltpu.MemorySpace.SMEM)

    def resident(shape):                       # weight block, fetched once
        return pl.BlockSpec(shape, lambda t: (0,) * len(shape))

    flops_step = (2 * _LANES * _GATE_LANES     # h @ Whh
                  + 2 * _LANES * _LANES        # h_new @ Wph
                  + 2 * 3 * _GI_LANES          # x FMAs
                  + 2 * S * _LANES             # state FMAs
                  + 12 * _LANES)               # gate elementwise
    bytes_accessed = 4 * (T * (3 + S) + _LANES
                          + 4 * _GI_LANES + _LANES * _GATE_LANES
                          + (S + 1) * _LANES + _LANES * _LANES
                          + T * _LANES + _LANES)

    logits_pad, h_pad = pl.pallas_call(
        kernel,
        grid=(T,),
        out_shape=(jax.ShapeDtypeStruct((T, 1, _LANES), jnp.float32),
                   jax.ShapeDtypeStruct((1, _LANES), jnp.float32)),
        in_specs=[smem, smem,                              # xs, states (SMEM scalars)
                  resident((1, _LANES)),                   # h0
                  resident((4, _GI_LANES)),                # wih (+ folded biases)
                  resident((_LANES, _GATE_LANES)),         # whh
                  resident((S + 1, _LANES)),               # wps (+ pi bias row)
                  resident((_LANES, _LANES))],             # wph
        out_specs=[pl.BlockSpec((1, 1, _LANES), lambda t: (t, 0, 0)),
                   pl.BlockSpec((1, _LANES), lambda t: (0, 0))],
        scratch_shapes=[pltpu.VMEM((1, _LANES), jnp.float32)],
        compiler_params=pltpu.CompilerParams(
            dimension_semantics=("arbitrary",)),           # serial recurrence
        cost_estimate=pl.CostEstimate(flops=T * flops_step,
                                      transcendentals=T * 3 * _LANES,
                                      bytes_accessed=bytes_accessed),
    )(xs, states, h0_pad, wih_b, whh_p, wps_b, wph_p)

    return logits_pad[:, 0, :3], h_pad[:, :H]


def rnn_policy_rollout(xs, states, h0, params, *, state_size, hidden_size):
    """Run T GRU+policy steps in one pallas_call. Returns (logits (T,3), h (1,1,H))."""
    S, H = state_size, hidden_size
    assert H <= _LANES, "gate packing assumes hidden_size <= 128"
    T = xs.shape[0]
    xs = xs.reshape(T, 3).astype(jnp.float32)
    states = states.reshape(T, S).astype(jnp.float32)
    h0_pad = jnp.zeros((1, _LANES), jnp.float32).at[:, :H].set(
        h0.reshape(1, H).astype(jnp.float32))
    logits, h_last = _rollout_call(xs, states, h0_pad,
                                   params["wih_b"], params["whh_p"],
                                   params["wps_b"], params["wph_p"],
                                   state_size=S, hidden_size=H)
    return logits, h_last.reshape(1, 1, H)


def rnn_policy_forward(s_, state, h_, params, *, state_size, hidden_size):
    """Single-step API matching RNNPolicy.forward: returns (s (1,3), h (1,1,H))."""
    logits, h = rnn_policy_rollout(s_.reshape(1, 3), state.reshape(1, state_size),
                                   h_, params,
                                   state_size=state_size, hidden_size=hidden_size)
    return logits.reshape(1, 3), h


def init_params(key, state_size, hidden_size):
    """Deterministic synthetic parameters matching nn.GRU(3,H,1) + nn.Linear(S+H,3)."""
    S, H = state_size, hidden_size
    assert H <= _LANES
    k = jax.random.split(key, 6)
    bound_g = 1.0 / jnp.sqrt(H)
    bound_p = 1.0 / jnp.sqrt(S + H)

    # PyTorch layouts: weight_ih_l0 (3H,3), weight_hh_l0 (3H,H), biases (3H,),
    # pi.weight (3, S+H), pi.bias (3,). Gate order along axis 0: r, z, n.
    w_ih = jax.random.uniform(k[0], (3 * H, 3), jnp.float32, -bound_g, bound_g)
    w_hh = jax.random.uniform(k[1], (3 * H, H), jnp.float32, -bound_g, bound_g)
    b_ih = jax.random.uniform(k[2], (3 * H,), jnp.float32, -bound_g, bound_g)
    b_hh = jax.random.uniform(k[3], (3 * H,), jnp.float32, -bound_g, bound_g)
    w_pi = jax.random.uniform(k[4], (3, S + H), jnp.float32, -bound_p, bound_p)
    b_pi = jax.random.uniform(k[5], (3,), jnp.float32, -bound_p, bound_p)

    # --- 128-lane-aligned gate packing with folded biases ---
    # wih_b rows 0..2: W_ih^T per gate block; row 3: [bi_r+bh_r | bi_z+bh_z | bi_n | bh_n]
    # (bh_r/bh_z may be folded into the input bias since only the sum enters sigmoid;
    #  bh_n must stay separate because it rides inside the r*(...) term.)
    wih_b = jnp.zeros((4, _GI_LANES), jnp.float32)
    for g in range(3):
        wih_b = wih_b.at[0:3, g * _LANES:g * _LANES + H].set(w_ih[g * H:(g + 1) * H, :].T)
    wih_b = wih_b.at[3, 0 * _LANES:0 * _LANES + H].set(b_ih[0:H] + b_hh[0:H])
    wih_b = wih_b.at[3, 1 * _LANES:1 * _LANES + H].set(b_ih[H:2 * H] + b_hh[H:2 * H])
    wih_b = wih_b.at[3, 2 * _LANES:2 * _LANES + H].set(b_ih[2 * H:3 * H])
    wih_b = wih_b.at[3, 3 * _LANES:3 * _LANES + H].set(b_hh[2 * H:3 * H])

    whh_p = jnp.zeros((_LANES, _GATE_LANES), jnp.float32)
    for g in range(3):
        whh_p = whh_p.at[0:H, g * _LANES:g * _LANES + H].set(w_hh[g * H:(g + 1) * H, :].T)

    # Policy head: state-side weights + pi bias as row S; h-side weights padded.
    wps_b = jnp.zeros((S + 1, _LANES), jnp.float32)
    wps_b = wps_b.at[0:S, 0:3].set(w_pi[:, :S].T)
    wps_b = wps_b.at[S, 0:3].set(b_pi)

    wph_p = jnp.zeros((_LANES, _LANES), jnp.float32)
    wph_p = wph_p.at[0:H, 0:3].set(w_pi[:, S:].T)

    return {
        "wih_b": wih_b, "whh_p": whh_p, "wps_b": wps_b, "wph_p": wph_p,
        # raw copies kept for the pure-JAX reference check
        "_raw": (w_ih, w_hh, b_ih, b_hh, w_pi, b_pi),
    }


# ----------------------------- pure-JAX reference -----------------------------

def _reference_step(x, state, h, params, S, H):
    w_ih, w_hh, b_ih, b_hh, w_pi, b_pi = params["_raw"]
    gi = x @ w_ih.T + b_ih
    gh = h @ w_hh.T + b_hh
    r = jax.nn.sigmoid(gi[:, :H] + gh[:, :H])
    z = jax.nn.sigmoid(gi[:, H:2 * H] + gh[:, H:2 * H])
    n = jnp.tanh(gi[:, 2 * H:] + r * gh[:, 2 * H:])
    h_new = (1.0 - z) * n + z * h
    s = jnp.concatenate([state, h_new], axis=1) @ w_pi.T + b_pi
    return s, h_new


def reference_rollout(xs, states, h0, params, S, H):
    h = h0.reshape(1, H)
    out = []
    for t in range(xs.shape[0]):
        s, h = _reference_step(xs[t].reshape(1, 3), states[t].reshape(1, S), h, params, S, H)
        out.append(s)
    return jnp.concatenate(out, axis=0), h.reshape(1, 1, H)


if __name__ == "__main__":
    STATE_SIZE = 4
    HIDDEN_SIZE = 32
    T = 8

    key = jax.random.PRNGKey(0)
    kp, ks, kst, kh = jax.random.split(key, 4)

    params = init_params(kp, STATE_SIZE, HIDDEN_SIZE)

    # --- single-step forward (module semantics) ---
    s_ = jax.random.normal(ks, (3,), jnp.float32)                  # s_.view(1,1,3)
    state = jax.random.normal(kst, (1, STATE_SIZE), jnp.float32)   # (1, S)
    h_ = jax.random.normal(kh, (1, 1, HIDDEN_SIZE), jnp.float32)   # (layers=1, batch=1, H)

    s_out, h_out = rnn_policy_forward(
        s_, state, h_, params, state_size=STATE_SIZE, hidden_size=HIDDEN_SIZE)
    jax.block_until_ready((s_out, h_out))

    s_ref, h_ref = _reference_step(s_.reshape(1, 3), state, h_.reshape(1, HIDDEN_SIZE),
                                   params, STATE_SIZE, HIDDEN_SIZE)
    assert s_out.shape == (1, 3) and h_out.shape == (1, 1, HIDDEN_SIZE)
    assert jnp.allclose(s_out, s_ref, atol=1e-4, rtol=1e-4)
    assert jnp.allclose(h_out.reshape(1, HIDDEN_SIZE), h_ref, atol=1e-4, rtol=1e-4)

    # --- in-kernel trajectory loop (T steps, one pallas_call) ---
    kx, kss = jax.random.split(jax.random.PRNGKey(1))
    xs = jax.random.normal(kx, (T, 3), jnp.float32)
    sts = jax.random.normal(kss, (T, STATE_SIZE), jnp.float32)

    logits_t, h_t = rnn_policy_rollout(
        xs, sts, h_, params, state_size=STATE_SIZE, hidden_size=HIDDEN_SIZE)
    jax.block_until_ready((logits_t, h_t))

    logits_r, h_r = reference_rollout(xs, sts, h_.reshape(1, HIDDEN_SIZE),
                                      params, STATE_SIZE, HIDDEN_SIZE)
    assert logits_t.shape == (T, 3) and h_t.shape == (1, 1, HIDDEN_SIZE)
    assert jnp.allclose(logits_t, logits_r, atol=1e-4, rtol=1e-4)
    assert jnp.allclose(h_t, h_r, atol=1e-4, rtol=1e-4)

    print("KERNEL_OK")
</pallas_src>

<mosaic_0001>
module attributes {stable_mosaic.version = 11 : i64} {
  func.func @_gru_pi_kernel(%arg0: i32, %arg1: memref<1x3xf32, #tpu.memory_space<smem>>, %arg2: memref<1x4xf32, #tpu.memory_space<smem>>, %arg3: memref<1x128xf32, #tpu.memory_space<vmem>>, %arg4: memref<4x512xf32, #tpu.memory_space<vmem>>, %arg5: memref<128x384xf32, #tpu.memory_space<vmem>>, %arg6: memref<5x128xf32, #tpu.memory_space<vmem>>, %arg7: memref<128x128xf32, #tpu.memory_space<vmem>>, %arg8: memref<1x1x128xf32, #tpu.memory_space<vmem>>, %arg9: memref<1x128xf32, #tpu.memory_space<vmem>>, %arg10: memref<1x128xf32, #tpu.memory_space<vmem>>) attributes {dimension_semantics = [#tpu.dimension_semantics<arbitrary>], iteration_bounds = array<i64: 1>, scalar_prefetch = 0 : i64, scratch_operands = 1 : i64, tpu.core_type = #tpu.core_type<tc>, window_params = [{transform_indices = @transform_0, window_bounds = array<i64: 1, 3>}, {transform_indices = @transform_1, window_bounds = array<i64: 1, 4>}, {pipeline_mode = #tpu.pipeline_mode<synchronous>, transform_indices = @transform_2, window_bounds = array<i64: 1, 128>}, {pipeline_mode = #tpu.pipeline_mode<synchronous>, transform_indices = @transform_3, window_bounds = array<i64: 4, 512>}, {pipeline_mode = #tpu.pipeline_mode<synchronous>, transform_indices = @transform_4, window_bounds = array<i64: 128, 384>}, {pipeline_mode = #tpu.pipeline_mode<synchronous>, transform_indices = @transform_5, window_bounds = array<i64: 5, 128>}, {pipeline_mode = #tpu.pipeline_mode<synchronous>, transform_indices = @transform_6, window_bounds = array<i64: 128, 128>}, {transform_indices = @transform_7, window_bounds = array<i64: 1, 1, 128>}, {pipeline_mode = #tpu.pipeline_mode<synchronous>, transform_indices = @transform_8, window_bounds = array<i64: 1, 128>}]} {
    %c0_i32 = arith.constant 0 : i32
    %0 = arith.cmpi eq, %arg0, %c0_i32 : i32
    %1 = arith.extui %0 : i1 to i32
    %c0_i32_0 = arith.constant 0 : i32
    %2 = arith.cmpi ne, %1, %c0_i32_0 : i32
    scf.if %2 {
      %c0_38 = arith.constant 0 : index
      %c0_39 = arith.constant 0 : index
      %85 = vector.load %arg3[%c0_38, %c0_39] : memref<1x128xf32, #tpu.memory_space<vmem>>, vector<1x128xf32>
      %c0_40 = arith.constant 0 : index
      %c0_41 = arith.constant 0 : index
      %86 = vector.load %arg10[%c0_40, %c0_41] : memref<1x128xf32, #tpu.memory_space<vmem>>, vector<1x128xf32>
      tpu.vector_store %arg10[%c0_40, %c0_41], %85 {strides = array<i32>} : memref<1x128xf32, #tpu.memory_space<vmem>>, vector<1x128xf32>,
    } else {
    }
    %c0 = arith.constant 0 : index
    %c0_1 = arith.constant 0 : index
    %3 = vector.load %arg10[%c0, %c0_1] : memref<1x128xf32, #tpu.memory_space<vmem>>, vector<1x128xf32>
    %c3 = arith.constant 3 : index
    %c0_2 = arith.constant 0 : index
    %4 = vector.load %arg4[%c3, %c0_2] : memref<4x512xf32, #tpu.memory_space<vmem>>, vector<1x512xf32>
    %5 = arith.index_cast %arg0 : i32 to index
    %c0_3 = arith.constant 0 : index
    %6 = memref.load %arg1[%5, %c0_3] : memref<1x3xf32, #tpu.memory_space<smem>>
    %c0_4 = arith.constant 0 : index
    %c0_5 = arith.constant 0 : index
    %7 = vector.load %arg4[%c0_4, %c0_5] : memref<4x512xf32, #tpu.memory_space<vmem>>, vector<1x512xf32>
    %8 = vector.broadcast %6 : f32 to vector<1x512xf32>
    %9 = arith.mulf %8, %7 : vector<1x512xf32>
    %10 = arith.addf %4, %9 : vector<1x512xf32>
    %11 = arith.index_cast %arg0 : i32 to index
    %c1 = arith.constant 1 : index
    %12 = memref.load %arg1[%11, %c1] : memref<1x3xf32, #tpu.memory_space<smem>>
    %c1_6 = arith.constant 1 : index
    %c0_7 = arith.constant 0 : index
    %13 = vector.load %arg4[%c1_6, %c0_7] : memref<4x512xf32, #tpu.memory_space<vmem>>, vector<1x512xf32>
    %14 = vector.broadcast %12 : f32 to vector<1x512xf32>
    %15 = arith.mulf %14, %13 : vector<1x512xf32>
    %16 = arith.addf %10, %15 : vector<1x512xf32>
    %17 = arith.index_cast %arg0 : i32 to index
    %c2 = arith.constant 2 : index
    %18 = memref.load %arg1[%17, %c2] : memref<1x3xf32, #tpu.memory_space<smem>>
    %c2_8 = arith.constant 2 : index
    %c0_9 = arith.constant 0 : index
    %19 = vector.load %arg4[%c2_8, %c0_9] : memref<4x512xf32, #tpu.memory_space<vmem>>, vector<1x512xf32>
    %20 = vector.broadcast %18 : f32 to vector<1x512xf32>
    %21 = arith.mulf %20, %19 : vector<1x512xf32>
    %22 = arith.addf %16, %21 : vector<1x512xf32>
    %c0_10 = arith.constant 0 : index
    %c0_11 = arith.constant 0 : index
    %23 = vector.load %arg5[%c0_10, %c0_11] : memref<128x384xf32, #tpu.memory_space<vmem>>, vector<128x384xf32>
    %cst = arith.constant dense<0.000000e+00> : vector<1x384xf32>
    %24 = tpu.matmul %3, %23, %cst {dimension_numbers = #tpu.dot_dimension_numbers<[1], [0], [0], [1], [0, 0, 1, 1], [], []>} : vector<1x128xf32>, vector<128x384xf32>, vector<1x384xf32> -> vector<1x384xf32>
    %25 = vector.extract_strided_slice %22 {offsets = [0, 0], sizes = [1, 128], strides = [1, 1]} : vector<1x512xf32> to vector<1x128xf32>
    %26 = vector.extract_strided_slice %24 {offsets = [0, 0], sizes = [1, 128], strides = [1, 1]} : vector<1x384xf32> to vector<1x128xf32>
    %27 = arith.addf %25, %26 : vector<1x128xf32>
    %28 = arith.negf %27 : vector<1x128xf32>
    %29 = math.exp %28 : vector<1x128xf32>
    %cst_12 = arith.constant 1.000000e+00 : f32
    %30 = vector.broadcast %cst_12 : f32 to vector<1x128xf32>
    %31 = arith.addf %30, %29 : vector<1x128xf32>
    %32 = arith.divf %30, %31 : vector<1x128xf32>
    %33 = vector.extract_strided_slice %22 {offsets = [0, 128], sizes = [1, 128], strides = [1, 1]} : vector<1x512xf32> to vector<1x128xf32>
    %34 = vector.extract_strided_slice %24 {offsets = [0, 128], sizes = [1, 128], strides = [1, 1]} : vector<1x384xf32> to vector<1x128xf32>
    %35 = arith.addf %33, %34 : vector<1x128xf32>
    %36 = arith.negf %35 : vector<1x128xf32>
    %37 = math.exp %36 : vector<1x128xf32>
    %cst_13 = arith.constant 1.000000e+00 : f32
    %38 = vector.broadcast %cst_13 : f32 to vector<1x128xf32>
    %39 = arith.addf %38, %37 : vector<1x128xf32>
    %40 = arith.divf %38, %39 : vector<1x128xf32>
    %41 = vector.extract_strided_slice %22 {offsets = [0, 256], sizes = [1, 128], strides = [1, 1]} : vector<1x512xf32> to vector<1x128xf32>
    %42 = vector.extract_strided_slice %24 {offsets = [0, 256], sizes = [1, 128], strides = [1, 1]} : vector<1x384xf32> to vector<1x128xf32>
    %43 = vector.extract_strided_slice %22 {offsets = [0, 384], sizes = [1, 128], strides = [1, 1]} : vector<1x512xf32> to vector<1x128xf32>
    %44 = arith.addf %42, %43 : vector<1x128xf32>
    %45 = arith.mulf %32, %44 : vector<1x128xf32>
    %46 = arith.addf %41, %45 : vector<1x128xf32>
    %47 = math.tanh %46 : vector<1x128xf32>
    %cst_14 = arith.constant 1.000000e+00 : f32
    %48 = vector.broadcast %cst_14 : f32 to vector<1x128xf32>
    %49 = arith.subf %48, %40 : vector<1x128xf32>
    %50 = arith.mulf %49, %47 : vector<1x128xf32>
    %51 = arith.mulf %40, %3 : vector<1x128xf32>
    %52 = arith.addf %50, %51 : vector<1x128xf32>
    %c0_15 = arith.constant 0 : index
    %c0_16 = arith.constant 0 : index
    %53 = vector.load %arg10[%c0_15, %c0_16] : memref<1x128xf32, #tpu.memory_space<vmem>>, vector<1x128xf32>
    tpu.vector_store %arg10[%c0_15, %c0_16], %52 {strides = array<i32>} : memref<1x128xf32, #tpu.memory_space<vmem>>, vector<1x128xf32>,
    %c0_17 = arith.constant 0 : index
    %c0_18 = arith.constant 0 : index
    %54 = vector.load %arg9[%c0_17, %c0_18] : memref<1x128xf32, #tpu.memory_space<vmem>>, vector<1x128xf32>
    tpu.vector_store %arg9[%c0_17, %c0_18], %52 {strides = array<i32>} : memref<1x128xf32, #tpu.memory_space<vmem>>, vector<1x128xf32>,
    %c4 = arith.constant 4 : index
    %c0_19 = arith.constant 0 : index
    %55 = vector.load %arg6[%c4, %c0_19] : memref<5x128xf32, #tpu.memory_space<vmem>>, vector<1x128xf32>
    %56 = arith.index_cast %arg0 : i32 to index
    %c0_20 = arith.constant 0 : index
    %57 = memref.load %arg2[%56, %c0_20] : memref<1x4xf32, #tpu.memory_space<smem>>
    %c0_21 = arith.constant 0 : index
    %c0_22 = arith.constant 0 : index
    %58 = vector.load %arg6[%c0_21, %c0_22] : memref<5x128xf32, #tpu.memory_space<vmem>>, vector<1x128xf32>
    %59 = vector.broadcast %57 : f32 to vector<1x128xf32>
    %60 = arith.mulf %59, %58 : vector<1x128xf32>
    %61 = arith.addf %55, %60 : vector<1x128xf32>
    %62 = arith.index_cast %arg0 : i32 to index
    %c1_23 = arith.constant 1 : index
    %63 = memref.load %arg2[%62, %c1_23] : memref<1x4xf32, #tpu.memory_space<smem>>
    %c1_24 = arith.constant 1 : index
    %c0_25 = arith.constant 0 : index
    %64 = vector.load %arg6[%c1_24, %c0_25] : memref<5x128xf32, #tpu.memory_space<vmem>>, vector<1x128xf32>
    %65 = vector.broadcast %63 : f32 to vector<1x128xf32>
    %66 = arith.mulf %65, %64 : vector<1x128xf32>
    %67 = arith.addf %61, %66 : vector<1x128xf32>
    %68 = arith.index_cast %arg0 : i32 to index
    %c2_26 = arith.constant 2 : index
    %69 = memref.load %arg2[%68, %c2_26] : memref<1x4xf32, #tpu.memory_space<smem>>
    %c2_27 = arith.constant 2 : index
    %c0_28 = arith.constant 0 : index
    %70 = vector.load %arg6[%c2_27, %c0_28] : memref<5x128xf32, #tpu.memory_space<vmem>>, vector<1x128xf32>
    %71 = vector.broadcast %69 : f32 to vector<1x128xf32>
    %72 = arith.mulf %71, %70 : vector<1x128xf32>
    %73 = arith.addf %67, %72 : vector<1x128xf32>
    %74 = arith.index_cast %arg0 : i32 to index
    %c3_29 = arith.constant 3 : index
    %75 = memref.load %arg2[%74, %c3_29] : memref<1x4xf32, #tpu.memory_space<smem>>
    %c3_30 = arith.constant 3 : index
    %c0_31 = arith.constant 0 : index
    %76 = vector.load %arg6[%c3_30, %c0_31] : memref<5x128xf32, #tpu.memory_space<vmem>>, vector<1x128xf32>
    %77 = vector.broadcast %75 : f32 to vector<1x128xf32>
    %78 = arith.mulf %77, %76 : vector<1x128xf32>
    %79 = arith.addf %73, %78 : vector<1x128xf32>
    %c0_32 = arith.constant 0 : index
    %c0_33 = arith.constant 0 : index
    %80 = vector.load %arg7[%c0_32, %c0_33] : memref<128x128xf32, #tpu.memory_space<vmem>>, vector<128x128xf32>
    %cst_34 = arith.constant dense<0.000000e+00> : vector<1x128xf32>
    %81 = tpu.matmul %52, %80, %cst_34 {dimension_numbers = #tpu.dot_dimension_numbers<[1], [0], [0], [1], [0, 0, 1, 1], [], []>} : vector<1x128xf32>, vector<128x128xf32>, vector<1x128xf32> -> vector<1x128xf32>
    %82 = arith.addf %79, %81 : vector<1x128xf32>
    %83 = vector.shape_cast %82 : vector<1x128xf32> to vector<1x1x128xf32>
    %c0_35 = arith.constant 0 : index
    %c0_36 = arith.constant 0 : index
    %c0_37 = arith.constant 0 : index
    %84 = vector.load %arg8[%c0_35, %c0_36, %c0_37] : memref<1x1x128xf32, #tpu.memory_space<vmem>>, vector<1x1x128xf32>
    tpu.vector_store %arg8[%c0_35, %c0_36, %c0_37], %83 {strides = array<i32>} : memref<1x1x128xf32, #tpu.memory_space<vmem>>, vector<1x1x128xf32>,
    return
  }
  func.func @transform_0(%arg0: i32) -> (i32, i32) {
    %c0_i32 = arith.constant 0 : i32
    %c0_i32_0 = arith.constant 0 : i32
    %c0_i32_1 = arith.constant 0 : i32
    return %c0_i32, %c0_i32_0 : i32, i32
  }
  func.func @transform_1(%arg0: i32) -> (i32, i32) {
    %c0_i32 = arith.constant 0 : i32
    %c0_i32_0 = arith.constant 0 : i32
    %c0_i32_1 = arith.constant 0 : i32
    return %c0_i32, %c0_i32_0 : i32, i32
  }
  func.func @transform_2(%arg0: i32) -> (i32, i32) {
    %c0_i32 = arith.constant 0 : i32
    %c0_i32_0 = arith.constant 0 : i32
    %c0_i32_1 = arith.constant 0 : i32
    return %c0_i32, %c0_i32_0 : i32, i32
  }
  func.func @transform_3(%arg0: i32) -> (i32, i32) {
    %c0_i32 = arith.constant 0 : i32
    %c0_i32_0 = arith.constant 0 : i32
    %c0_i32_1 = arith.constant 0 : i32
    return %c0_i32, %c0_i32_0 : i32, i32
  }
  func.func @transform_4(%arg0: i32) -> (i32, i32) {
    %c0_i32 = arith.constant 0 : i32
    %c0_i32_0 = arith.constant 0 : i32
    %c0_i32_1 = arith.constant 0 : i32
    return %c0_i32, %c0_i32_0 : i32, i32
  }
  func.func @transform_5(%arg0: i32) -> (i32, i32) {
    %c0_i32 = arith.constant 0 : i32
    %c0_i32_0 = arith.constant 0 : i32
    %c0_i32_1 = arith.constant 0 : i32
    return %c0_i32, %c0_i32_0 : i32, i32
  }
  func.func @transform_6(%arg0: i32) -> (i32, i32) {
    %c0_i32 = arith.constant 0 : i32
    %c0_i32_0 = arith.constant 0 : i32
    %c0_i32_1 = arith.constant 0 : i32
    return %c0_i32, %c0_i32_0 : i32, i32
  }
  func.func @transform_7(%arg0: i32) -> (i32, i32, i32) {
    %c0_i32 = arith.constant 0 : i32
    %c0_i32_0 = arith.constant 0 : i32
    %c0_i32_1 = arith.constant 0 : i32
    return %arg0, %c0_i32, %c0_i32_0 : i32, i32, i32
  }
  func.func @transform_8(%arg0: i32) -> (i32, i32) {
    %c0_i32 = arith.constant 0 : i32
    %c0_i32_0 = arith.constant 0 : i32
    %c0_i32_1 = arith.constant 0 : i32
    return %c0_i32, %c0_i32_0 : i32, i32
  }
}

</mosaic_0001>

<llo_original>
// kernel: _rollout_call.1
$region0: #{_rollout_call.1}
  #allocation0 [shape = 'u32[]', space=smem, size = 0x4, offset = 0x4, fixed_abs, tag = 'smem constant byte address 0x4 - core index']
  #allocation1 [shape = 'u32[144,128]{1,0:T(1,128)}', space=vmem, size = 0x12000, scoped, tag = 'internal scratch']
  #allocation2 [shape = 'f32[1,128]{1,0:T(1,128)}', space=vmem, size = 0x200, scoped, tag = 'scratch operand']
  %s0 = inlined_call_operand.hbm [shape: f32[1,3], index: 0, kind: input, shape index: {}]
  %s1 = inlined_call_operand.vmem [shape: f32[1,4], index: 1, kind: input, shape index: {}]
  %s2 = inlined_call_operand.hbm [shape: f32[1,128], index: 2, kind: input, shape index: {}]
  %s3 = inlined_call_operand.hbm [shape: f32[4,512], index: 3, kind: input, shape index: {}]
  %s4 = inlined_call_operand.hbm [shape: f32[128,384], index: 4, kind: input, shape index: {}]
  %s5 = inlined_call_operand.vmem [shape: f32[5,128], index: 5, kind: input, shape index: {}]
  %s6 = inlined_call_operand.hbm [shape: f32[128,128], index: 6, kind: input, shape index: {}]
  %s7 = inlined_call_operand.vmem [shape: f32[1,1,128], index: 7, kind: output, shape index: {0}]
  %s8 = inlined_call_operand.hbm [shape: f32[1,128], index: 8, kind: output, shape index: {1}]
  %9 = xla_tuple %s7, %s8
  %s10 = sld [smem:[#allocation0]]
  $region74: #{_rollout_call.1} parent=0
    _
  %s12 = ssub.s32 1, %s10
  %s13 = scalar_select 0, %s12, %s10
  $region1: #{_rollout_call.1} parent=0
    #allocation3 [shape = 'u8[512]{0}', space=smem, size = 0x200, scoped, tag = 'input window, operand 0, single buffered']
    #allocation4 [shape = 's32[1]{0}', space=sflag, size = 0x4, scoped, tag = 'scoped memory for _rollout_call.1']
    #allocation5 [shape = 's32[1]{0}', space=sflag, size = 0x4, scoped, tag = 'scoped memory for _rollout_call.1']
    #allocation6 [shape = 's32[1]{0}', space=sflag, size = 0x4, scoped, tag = 'scoped memory for _rollout_call.1']
    #allocation7 [shape = 's32[1]{0}', space=sflag, size = 0x4, scoped, tag = 'scoped memory for _rollout_call.1']
    #allocation8 [shape = 'u8[512]{0}', space=smem, size = 0x200, scoped, tag = 'input window, operand 1, single buffered']
    #allocation9 [shape = 'u8[512]{0}', space=vmem, size = 0x400, scoped, tag = 'input window, operand 2, single buffered']
    #allocation10 [shape = 'u8[8192]{0}', space=vmem, size = 0x2000, scoped, tag = 'input window, operand 3, single buffered']
    #allocation11 [shape = 's32[1]{0}', space=sflag, size = 0x4, scoped, tag = 'scoped memory for _rollout_call.1']
    #allocation12 [shape = 'u8[196608]{0}', space=vmem, size = 0x30000, scoped, tag = 'input window, operand 4, single buffered']
    #allocation13 [shape = 'u8[65536]{0}', space=vmem, size = 0x10000, scoped, tag = 'input window, operand 6, single buffered']
    #allocation14 [shape = 's32[1]{0}', space=sflag, size = 0x4, scoped, tag = 'scoped memory for _rollout_call.1']
    #allocation15 [shape = 'u8[512]{0}', space=vmem, size = 0x400, scoped, tag = 'output window, operand 1, single buffered']
    %14 = vsyncpa [#allocation6], 0
    %15 = vsyncpa [#allocation7], 0
    %16 = vsyncpa [#allocation4], 0
    %17 = vsyncpa [#allocation11], 0
    %18 = vsyncpa [#allocation14], 0
    %19 = vsyncpa [#allocation5], 0
    // Predicated region
    $region2: #{_rollout_call.1} parent=1 // pred_check
      _
    $region3: #{_rollout_call.1} parent=1 // pred_check_branch
      %21 = sbr.rel (0) target = $region5
    $region4: #{_rollout_call.1} parent=1 // pred_region
      %s23 = ssub.s32 16, 16
      %24 = vsyncadd [#allocation6], %s23
      %27 = dma.hbm_to_smem %s0, 16, [#allocation3], [#allocation6]
    $region5: #{_rollout_call.1} parent=1 // pred_fallthru
      _
    // Predicated region
    $region6: #{_rollout_call.1} parent=1 // pred_check
      _
    $region7: #{_rollout_call.1} parent=1 // pred_check_branch
      %29 = sbr.rel (0) target = $region9
    $region8: #{_rollout_call.1} parent=1 // pred_region
      %s31 = ssub.s32 16, 16
      %32 = vsyncadd [#allocation7], %s31
      %s34 = sshll.u32 %s1, 4
      %s35 = int_to_ptr.vmem [resolvable:$true] %s34
      %37 = dma.vmem_to_smem %s35, 16, [#allocation8], [#allocation7]
    $region9: #{_rollout_call.1} parent=1 // pred_fallthru
      _
    // Predicated region
    $region10: #{_rollout_call.1} parent=1 // pred_check
      _
    $region11: #{_rollout_call.1} parent=1 // pred_check_branch
      %39 = sbr.rel (0) target = $region13
    $region12: #{_rollout_call.1} parent=1 // pred_region
      %s41 = ssub.s32 16, 16
      %42 = vsyncadd [#allocation4], %s41
      %s44 = sshll.u32 [#allocation9], 4
      %s45 = int_to_ptr.vmem [resolvable:$true] %s44
      %47 = dma.hbm_to_vmem [thread:$0]  %s2, 16, %s45, [#allocation4]
    $region13: #{_rollout_call.1} parent=1 // pred_fallthru
      _
    // Predicated region
    $region14: #{_rollout_call.1} parent=1 // pred_check
      _
    $region15: #{_rollout_call.1} parent=1 // pred_check_branch
      %49 = sbr.rel (0) target = $region17
    $region16: #{_rollout_call.1} parent=1 // pred_region
      %s51 = ssub.s32 256, 256
      %52 = vsyncadd [#allocation11], %s51
      %s54 = sshll.u32 [#allocation10], 4
      %s55 = int_to_ptr.vmem [resolvable:$true] %s54
      %57 = dma.hbm_to_vmem [thread:$0]  %s3, 256, %s55, [#allocation11]
    $region17: #{_rollout_call.1} parent=1 // pred_fallthru
      _
    // Predicated region
    $region18: #{_rollout_call.1} parent=1 // pred_check
      _
    $region19: #{_rollout_call.1} parent=1 // pred_check_branch
      %59 = sbr.rel (0) target = $region21
    $region20: #{_rollout_call.1} parent=1 // pred_region
      %s61 = ssub.s32 6144, 6144
      %62 = vsyncadd [#allocation11], %s61
      %s63 = sshll.u32 [#allocation12], 4
      %s64 = int_to_ptr.vmem [resolvable:$true] %s63
      %69 = dma.hbm_to_vmem [thread:$0]  %s4, 6144, %s64, [#allocation11], 384, 384, 24
    $region21: #{_rollout_call.1} parent=1 // pred_fallthru
      _
    // Predicated region
    $region22: #{_rollout_call.1} parent=1 // pred_check
      _
    $region23: #{_rollout_call.1} parent=1 // pred_check_branch
      %71 = sbr.rel (0) target = $region25
    $region24: #{_rollout_call.1} parent=1 // pred_region
      _
    $region25: #{_rollout_call.1} parent=1 // pred_fallthru
      _
    // Predicated region
    $region26: #{_rollout_call.1} parent=1 // pred_check
      _
    $region27: #{_rollout_call.1} parent=1 // pred_check_branch
      %73 = sbr.rel (0) target = $region29
    $region28: #{_rollout_call.1} parent=1 // pred_region
      %s75 = ssub.s32 2048, 2048
      %76 = vsyncadd [#allocation14], %s75
      %s77 = sshll.u32 [#allocation13], 4
      %s78 = int_to_ptr.vmem [resolvable:$true] %s77
      %83 = dma.hbm_to_vmem [thread:$0]  %s6, 2048, %s78, [#allocation14], 128, 128, 8
    $region29: #{_rollout_call.1} parent=1 // pred_fallthru
      _
    // Predicated region
    $region30: #{_rollout_call.1} parent=1 // pred_check
      _
    $region31: #{_rollout_call.1} parent=1 // pred_check_branch
      %85 = sbr.rel (0) target = $region33
    $region32: #{_rollout_call.1} parent=1 // pred_region
      %86 = dma.done [#allocation6], 16
    $region33: #{_rollout_call.1} parent=1 // pred_fallthru
      _
    // Predicated region
    $region34: #{_rollout_call.1} parent=1 // pred_check
      _
    $region35: #{_rollout_call.1} parent=1 // pred_check_branch
      %88 = sbr.rel (0) target = $region37
    $region36: #{_rollout_call.1} parent=1 // pred_region
      %89 = dma.done [#allocation7], 16
    $region37: #{_rollout_call.1} parent=1 // pred_fallthru
      _
    // Predicated region
    $region38: #{_rollout_call.1} parent=1 // pred_check
      _
    $region39: #{_rollout_call.1} parent=1 // pred_check_branch
      %91 = sbr.rel (0) target = $region41
    $region40: #{_rollout_call.1} parent=1 // pred_region
      %92 = dma.done [#allocation4], 16
    $region41: #{_rollout_call.1} parent=1 // pred_fallthru
      _
    // Predicated region
    $region42: #{_rollout_call.1} parent=1 // pred_check
      _
    $region43: #{_rollout_call.1} parent=1 // pred_check_branch
      %94 = sbr.rel (0) target = $region45
    $region44: #{_rollout_call.1} parent=1 // pred_region
      %95 = dma.done [#allocation11], 256
    $region45: #{_rollout_call.1} parent=1 // pred_fallthru
      _
    // Predicated region
    $region46: #{_rollout_call.1} parent=1 // pred_check
      _
    $region47: #{_rollout_call.1} parent=1 // pred_check_branch
      %97 = sbr.rel (0) target = $region49
    $region48: #{_rollout_call.1} parent=1 // pred_region
      %98 = dma.done [#allocation11], 6144
    $region49: #{_rollout_call.1} parent=1 // pred_fallthru
      _
    // Predicated region
    $region50: #{_rollout_call.1} parent=1 // pred_check
      _
    $region51: #{_rollout_call.1} parent=1 // pred_check_branch
      %100 = sbr.rel (0) target = $region53
    $region52: #{_rollout_call.1} parent=1 // pred_region
      %101 = dma.done [#allocation14], 2048
    $region53: #{_rollout_call.1} parent=1 // pred_fallthru
      _
    %102 = sfence
    %p103 = scmp.eq.s32.totalorder 0, 0
    // Predicated region
    $region54: #{_rollout_call.1} parent=1 // pred_check
      %p104 = pneg %p103
    $region55: #{_rollout_call.1} parent=1 // pred_check_branch
      %106 = sbr.rel (%p104) target = $region57
    $region56: #{_rollout_call.1} parent=1 // pred_region
      %v107 = vld [vmem:[#allocation9] sm:$0x1]
      %108 = vst [vmem:[#allocation2] sm:$0x1] %v107
    $region57: #{_rollout_call.1} parent=1 // pred_fallthru
      _
    %v109 = vld [vmem:[#allocation2] sm:$0x1]
    %s110 = scalar_lea.vmem [#allocation10], 3
    %v111 = vld [vmem:[%s110] ss:$4 sm:$0xf]
    %s112 = smul.u32 0, 128
    %s113 = sld [smem:[#allocation3 + %s112]]
    %v114 = vld [vmem:[#allocation10] ss:$4 sm:$0xf]
    %v115 = vstv %s113
    %v116 = vmul.f32 %v115, %v114
    %v117 = vadd.f32 %v111, %v116
    %s118 = sadd.s32 %s112, 1
    %s119 = sld [smem:[#allocation3 + %s118]]
    %s120 = scalar_lea.vmem [#allocation10], 1
    %v121 = vld [vmem:[%s120] ss:$4 sm:$0xf]
    %v122 = vstv %s119
    %v123 = vmul.f32 %v122, %v121
    %v124 = vadd.f32 %v117, %v123
    %s125 = sadd.s32 %s112, 2
    %s126 = sld [smem:[#allocation3 + %s125]]
    %s127 = scalar_lea.vmem [#allocation10], 2
    %v128 = vld [vmem:[%s127] ss:$4 sm:$0xf]
    %v129 = vstv %s126
    %v130 = vmul.f32 %v129, %v128
    %v131 = vadd.f32 %v124, %v130
    %v132 = vld [vmem:[#allocation12] sm:$0xff]
    %v133 = vld [vmem:[#allocation12 + $0x8] sm:$0xff]
    %v134 = vld [vmem:[#allocation12 + $0x10] sm:$0xff]
    %v135 = vld [vmem:[#allocation12 + $0x18] sm:$0xff]
    %v136 = vld [vmem:[#allocation12 + $0x20] sm:$0xff]
    %v137 = vld [vmem:[#allocation12 + $0x28] sm:$0xff]
    %v138 = vld [vmem:[#allocation12 + $0x30] sm:$0xff]
    %v139 = vld [vmem:[#allocation12 + $0x38] sm:$0xff]
    %v140 = vld [vmem:[#allocation12 + $0x40] sm:$0xff]
    %v141 = vld [vmem:[#allocation12 + $0x48] sm:$0xff]
    %v142 = vld [vmem:[#allocation12 + $0x50] sm:$0xff]
    %v143 = vld [vmem:[#allocation12 + $0x58] sm:$0xff]
    %v144 = vld [vmem:[#allocation12 + $0x60] sm:$0xff]
    %v145 = vld [vmem:[#allocation12 + $0x68] sm:$0xff]
    %v146 = vld [vmem:[#allocation12 + $0x70] sm:$0xff]
    %v147 = vld [vmem:[#allocation12 + $0x78] sm:$0xff]
    %v148 = vld [vmem:[#allocation12 + $0x80] sm:$0xff]
    %v149 = vld [vmem:[#allocation12 + $0x88] sm:$0xff]
    %v150 = vld [vmem:[#allocation12 + $0x90] sm:$0xff]
    %v151 = vld [vmem:[#allocation12 + $0x98] sm:$0xff]
    %v152 = vld [vmem:[#allocation12 + $0xa0] sm:$0xff]
    %v153 = vld [vmem:[#allocation12 + $0xa8] sm:$0xff]
    %v154 = vld [vmem:[#allocation12 + $0xb0] sm:$0xff]
    %v155 = vld [vmem:[#allocation12 + $0xb8] sm:$0xff]
    %v156 = vld [vmem:[#allocation12 + $0xc0] sm:$0xff]
    %v157 = vld [vmem:[#allocation12 + $0xc8] sm:$0xff]
    %v158 = vld [vmem:[#allocation12 + $0xd0] sm:$0xff]
    %v159 = vld [vmem:[#allocation12 + $0xd8] sm:$0xff]
    %v160 = vld [vmem:[#allocation12 + $0xe0] sm:$0xff]
    %v161 = vld [vmem:[#allocation12 + $0xe8] sm:$0xff]
    %v162 = vld [vmem:[#allocation12 + $0xf0] sm:$0xff]
    %v163 = vld [vmem:[#allocation12 + $0xf8] sm:$0xff]
    %v164 = vld [vmem:[#allocation12 + $0x100] sm:$0xff]
    %v165 = vld [vmem:[#allocation12 + $0x108] sm:$0xff]
    %v166 = vld [vmem:[#allocation12 + $0x110] sm:$0xff]
    %v167 = vld [vmem:[#allocation12 + $0x118] sm:$0xff]
    %v168 = vld [vmem:[#allocation12 + $0x120] sm:$0xff]
    %v169 = vld [vmem:[#allocation12 + $0x128] sm:$0xff]
    %v170 = vld [vmem:[#allocation12 + $0x130] sm:$0xff]
    %v171 = vld [vmem:[#allocation12 + $0x138] sm:$0xff]
    %v172 = vld [vmem:[#allocation12 + $0x140] sm:$0xff]
    %v173 = vld [vmem:[#allocation12 + $0x148] sm:$0xff]
    %v174 = vld [vmem:[#allocation12 + $0x150] sm:$0xff]
    %v175 = vld [vmem:[#allocation12 + $0x158] sm:$0xff]
    %v176 = vld [vmem:[#allocation12 + $0x160] sm:$0xff]
    %v177 = vld [vmem:[#allocation12 + $0x168] sm:$0xff]
    %v178 = vld [vmem:[#allocation12 + $0x170] sm:$0xff]
    %v179 = vld [vmem:[#allocation12 + $0x178] sm:$0xff]
    %180 = vmatprep.subr.mxu0 %v178
    %181 = vmatpush1.msra.mxu0 %v177
    %182 = vmatprep.subr.mxu0 %v175
    %183 = vmatpush1.msra.mxu0 %v174
    %184 = vmatprep.subr.mxu0 %v172
    %185 = vmatpush1.msra.mxu0 %v171
    %186 = vmatprep.subr.mxu0 %v169
    %187 = vmatpush1.msra.mxu0 %v168
    %188 = vmatprep.subr.mxu0 %v166
    %189 = vmatpush1.msra.mxu0 %v165
    %190 = vmatprep.subr.mxu0 %v163
    %191 = vmatpush1.msra.mxu0 %v162
    %192 = vmatprep.subr.mxu0 %v160
    %193 = vmatpush1.msra.mxu0 %v159
    %194 = vmatprep.subr.mxu0 %v157
    %195 = vmatpush1.msra.mxu0 %v156
    %196 = vmatprep.subr.mxu0 %v154
    %197 = vmatpush1.msra.mxu0 %v153
    %198 = vmatprep.subr.mxu0 %v151
    %199 = vmatpush1.msra.mxu0 %v150
    %200 = vmatprep.subr.mxu0 %v148
    %201 = vmatpush1.msra.mxu0 %v147
    %202 = vmatprep.subr.mxu0 %v145
    %203 = vmatpush1.msra.mxu0 %v144
    %204 = vmatprep.subr.mxu0 %v142
    %205 = vmatpush1.msra.mxu0 %v141
    %206 = vmatprep.subr.mxu0 %v139
    %207 = vmatpush1.msra.mxu0 %v138
    %208 = vmatprep.subr.mxu0 %v136
    %209 = vmatpush1.msra.mxu0 %v135
    %210 = vmatprep.subr.mxu0 %v133
    %211 = vmatpush1.msra.mxu0 %v132
    %212 = vmatprep.subr.mxu0 0.0
    %213 = vmatpush2.msra.mxu0 0.0
    %214 = vmatprep.subr.mxu0 0.0
    %215 = vmatpush2.msra.mxu0 0.0
    %216 = vmatprep.subr.mxu0 0.0
    %217 = vmatpush2.msra.mxu0 0.0
    %218 = vmatprep.subr.mxu0 0.0
    %219 = vmatpush2.msra.mxu0 0.0
    %220 = vmatprep.subr.mxu0 0.0
    %221 = vmatpush2.msra.mxu0 0.0
    %222 = vmatprep.subr.mxu0 0.0
    %223 = vmatpush2.msra.mxu0 0.0
    %224 = vmatprep.subr.mxu0 0.0
    %225 = vmatpush2.msra.mxu0 0.0
    %226 = vmatprep.subr.mxu0 0.0
    %227 = vmatpush2.msra.mxu0 0.0
    %228 = vmatprep.subr.mxu0 0.0
    %229 = vmatpush2.msra.mxu0 0.0
    %230 = vmatprep.subr.mxu0 0.0
    %231 = vmatpush2.msra.mxu0 0.0
    %232 = vmatprep.subr.mxu0 0.0
    %233 = vmatpush2.msra.mxu0 0.0
    %234 = vmatprep.subr.mxu0 0.0
    %235 = vmatpush2.msra.mxu0 0.0
    %236 = vmatprep.subr.mxu0 0.0
    %237 = vmatpush2.msra.mxu0 0.0
    %238 = vmatprep.subr.mxu0 0.0
    %239 = vmatpush2.msra.mxu0 0.0
    %240 = vmatprep.subr.mxu0 0.0
    %241 = vmatpush2.msra.mxu0 0.0
    %242 = vmatprep.subr.mxu0 0.0
    %243 = vmatpush2.msra.mxu0 0.0
    %244 = vmatprep.mubr.f32.mxu0 0.0
    %245 = vmatmul.mubr.f32.gmra.mxu0 %v109
    %v246 = vpop.f32.mrf.mxu0
    %v247 = vadd.f32 0.0, %v246
    %v248 = vpop.f32.mrf.mxu0
    %v249 = vadd.f32 0.0, %v248
    %250 = vdwg.mxu0
    %251 = vmatprep.subr.mxu0 0.0
    %252 = vmatpush1.msra.mxu0 %v179
    %253 = vmatprep.subr.mxu0 0.0
    %254 = vmatpush1.msra.mxu0 %v176
    %255 = vmatprep.subr.mxu0 0.0
    %256 = vmatpush1.msra.mxu0 %v173
    %257 = vmatprep.subr.mxu0 0.0
    %258 = vmatpush1.msra.mxu0 %v170
    %259 = vmatprep.subr.mxu0 0.0
    %260 = vmatpush1.msra.mxu0 %v167
    %261 = vmatprep.subr.mxu0 0.0
    %262 = vmatpush1.msra.mxu0 %v164
    %263 = vmatprep.subr.mxu0 0.0
    %264 = vmatpush1.msra.mxu0 %v161
    %265 = vmatprep.subr.mxu0 0.0
    %266 = vmatpush1.msra.mxu0 %v158
    %267 = vmatprep.subr.mxu0 0.0
    %268 = vmatpush1.msra.mxu0 %v155
    %269 = vmatprep.subr.mxu0 0.0
    %270 = vmatpush1.msra.mxu0 %v152
    %271 = vmatprep.subr.mxu0 0.0
    %272 = vmatpush1.msra.mxu0 %v149
    %273 = vmatprep.subr.mxu0 0.0
    %274 = vmatpush1.msra.mxu0 %v146
    %275 = vmatprep.subr.mxu0 0.0
    %276 = vmatpush1.msra.mxu0 %v143
    %277 = vmatprep.subr.mxu0 0.0
    %278 = vmatpush1.msra.mxu0 %v140
    %279 = vmatprep.subr.mxu0 0.0
    %280 = vmatpush1.msra.mxu0 %v137
    %281 = vmatprep.subr.mxu0 0.0
    %282 = vmatpush1.msra.mxu0 %v134
    %283 = vmatprep.subr.mxu0 0.0
    %284 = vmatpush2.msra.mxu0 0.0
    %285 = vmatprep.subr.mxu0 0.0
    %286 = vmatpush2.msra.mxu0 0.0
    %287 = vmatprep.subr.mxu0 0.0
    %288 = vmatpush2.msra.mxu0 0.0
    %289 = vmatprep.subr.mxu0 0.0
    %290 = vmatpush2.msra.mxu0 0.0
    %291 = vmatprep.subr.mxu0 0.0
    %292 = vmatpush2.msra.mxu0 0.0
    %293 = vmatprep.subr.mxu0 0.0
    %294 = vmatpush2.msra.mxu0 0.0
    %295 = vmatprep.subr.mxu0 0.0
    %296 = vmatpush2.msra.mxu0 0.0
    %297 = vmatprep.subr.mxu0 0.0
    %298 = vmatpush2.msra.mxu0 0.0
    %299 = vmatprep.subr.mxu0 0.0
    %300 = vmatpush2.msra.mxu0 0.0
    %301 = vmatprep.subr.mxu0 0.0
    %302 = vmatpush2.msra.mxu0 0.0
    %303 = vmatprep.subr.mxu0 0.0
    %304 = vmatpush2.msra.mxu0 0.0
    %305 = vmatprep.subr.mxu0 0.0
    %306 = vmatpush2.msra.mxu0 0.0
    %307 = vmatprep.subr.mxu0 0.0
    %308 = vmatpush2.msra.mxu0 0.0
    %309 = vmatprep.subr.mxu0 0.0
    %310 = vmatpush2.msra.mxu0 0.0
    %311 = vmatprep.subr.mxu0 0.0
    %312 = vmatpush2.msra.mxu0 0.0
    %313 = vmatprep.subr.mxu0 0.0
    %314 = vmatpush2.msra.mxu0 0.0
    %315 = vmatprep.mubr.f32.mxu0 0.0
    %316 = vmatmul.mubr.f32.gmra.mxu0 %v109
    %v317 = vpop.f32.mrf.mxu0
    %v318 = vadd.f32 0.0, %v317
    %v319 = vpop.f32.mrf.mxu0
    %320 = vdwg.mxu0
    %v321 = vadd.f32 %v131, %v247
    %v322 = vxor.u32 %v321, 2147483648
    %v323 = vmul.f32 %v322, 1.442695
    %v324 = vpow.pop %v323
    %v325 = vadd.f32 %v324, 1.0
    %v326 = vrcp.pop %v325
    %v327 = vmul.f32 1.0, %v326
    %v329 = vrot.slane %v131, 1
    %v331 = vadd.f32 %v329, %v249
    %v332 = vxor.u32 %v331, 2147483648
    %v333 = vmul.f32 %v332, 1.442695
    %v334 = vpow.pop %v333
    %v335 = vadd.f32 %v334, 1.0
    %v336 = vrcp.pop %v335
    %v337 = vmul.f32 1.0, %v336
    %v338 = vlaneseq
    %v339 = vshrl.u32 %v338, 7
    %v340 = vsub.s32 3, %v339
    %v341 = vrot.slane %v131, %v340
    %v343 = vadd.f32 %v318, %v341
    %v344 = vmul.f32 %v327, %v343
    %v345 = vrot.slane %v131, 2
    %v347 = vadd.f32 %v345, %v344
    %v348 = vtanh.pop %v347
    %v349 = vsub.f32 1.0, %v337
    %v350 = vmul.f32 %v349, %v348
    %v351 = vmul.f32 %v337, %v109
    %v352 = vadd.f32 %v350, %v351
    %353 = vst [vmem:[#allocation2] sm:$0x1] %v352
    %354 = vst [vmem:[#allocation15] sm:$0x1] %v352
    %v355 = vld [vmem:[%s5 + $0x4] sm:$0x1]
    %s356 = sld [smem:[#allocation8 + %s112]]
    %v357 = vld [vmem:[%s5] sm:$0x1]
    %v358 = vstv %s356
    %v359 = vmul.f32 %v358, %v357
    %v360 = vadd.f32 %v355, %v359
    %s361 = sld [smem:[#allocation8 + %s118]]
    %v362 = vld [vmem:[%s5 + $0x1] sm:$0x1]
    %v363 = vstv %s361
    %v364 = vmul.f32 %v363, %v362
    %v365 = vadd.f32 %v360, %v364
    %s366 = sld [smem:[#allocation8 + %s125]]
    %v367 = vld [vmem:[%s5 + $0x2] sm:$0x1]
    %v368 = vstv %s366
    %v369 = vmul.f32 %v368, %v367
    %v370 = vadd.f32 %v365, %v369
    %s371 = sadd.s32 %s112, 3
    %s372 = sld [smem:[#allocation8 + %s371]]
    %v373 = vld [vmem:[%s5 + $0x3] sm:$0x1]
    %v374 = vstv %s372
    %v375 = vmul.f32 %v374, %v373
    %v376 = vadd.f32 %v370, %v375
    %v377 = vld [vmem:[#allocation13] sm:$0xff]
    %v378 = vld [vmem:[#allocation13 + $0x8] sm:$0xff]
    %v379 = vld [vmem:[#allocation13 + $0x10] sm:$0xff]
    %v380 = vld [vmem:[#allocation13 + $0x18] sm:$0xff]
    %v381 = vld [vmem:[#allocation13 + $0x20] sm:$0xff]
    %v382 = vld [vmem:[#allocation13 + $0x28] sm:$0xff]
    %v383 = vld [vmem:[#allocation13 + $0x30] sm:$0xff]
    %v384 = vld [vmem:[#allocation13 + $0x38] sm:$0xff]
    %v385 = vld [vmem:[#allocation13 + $0x40] sm:$0xff]
    %v386 = vld [vmem:[#allocation13 + $0x48] sm:$0xff]
    %v387 = vld [vmem:[#allocation13 + $0x50] sm:$0xff]
    %v388 = vld [vmem:[#allocation13 + $0x58] sm:$0xff]
    %v389 = vld [vmem:[#allocation13 + $0x60] sm:$0xff]
    %v390 = vld [vmem:[#allocation13 + $0x68] sm:$0xff]
    %v391 = vld [vmem:[#allocation13 + $0x70] sm:$0xff]
    %v392 = vld [vmem:[#allocation13 + $0x78] sm:$0xff]
    %393 = vmatprep.subr.mxu0 0.0
    %394 = vmatpush1.msra.mxu0 %v392
    %395 = vmatprep.subr.mxu0 0.0
    %396 = vmatpush1.msra.mxu0 %v391
    %397 = vmatprep.subr.mxu0 0.0
    %398 = vmatpush1.msra.mxu0 %v390
    %399 = vmatprep.subr.mxu0 0.0
    %400 = vmatpush1.msra.mxu0 %v389
    %401 = vmatprep.subr.mxu0 0.0
    %402 = vmatpush1.msra.mxu0 %v388
    %403 = vmatprep.subr.mxu0 0.0
    %404 = vmatpush1.msra.mxu0 %v387
    %405 = vmatprep.subr.mxu0 0.0
    %406 = vmatpush1.msra.mxu0 %v386
    %407 = vmatprep.subr.mxu0 0.0
    %408 = vmatpush1.msra.mxu0 %v385
    %409 = vmatprep.subr.mxu0 0.0
    %410 = vmatpush1.msra.mxu0 %v384
    %411 = vmatprep.subr.mxu0 0.0
    %412 = vmatpush1.msra.mxu0 %v383
    %413 = vmatprep.subr.mxu0 0.0
    %414 = vmatpush1.msra.mxu0 %v382
    %415 = vmatprep.subr.mxu0 0.0
    %416 = vmatpush1.msra.mxu0 %v381
    %417 = vmatprep.subr.mxu0 0.0
    %418 = vmatpush1.msra.mxu0 %v380
    %419 = vmatprep.subr.mxu0 0.0
    %420 = vmatpush1.msra.mxu0 %v379
    %421 = vmatprep.subr.mxu0 0.0
    %422 = vmatpush1.msra.mxu0 %v378
    %423 = vmatprep.subr.mxu0 0.0
    %424 = vmatpush1.msra.mxu0 %v377
    %425 = vmatprep.subr.mxu0 0.0
    %426 = vmatpush2.msra.mxu0 0.0
    %427 = vmatprep.subr.mxu0 0.0
    %428 = vmatpush2.msra.mxu0 0.0
    %429 = vmatprep.subr.mxu0 0.0
    %430 = vmatpush2.msra.mxu0 0.0
    %431 = vmatprep.subr.mxu0 0.0
    %432 = vmatpush2.msra.mxu0 0.0
    %433 = vmatprep.subr.mxu0 0.0
    %434 = vmatpush2.msra.mxu0 0.0
    %435 = vmatprep.subr.mxu0 0.0
    %436 = vmatpush2.msra.mxu0 0.0
    %437 = vmatprep.subr.mxu0 0.0
    %438 = vmatpush2.msra.mxu0 0.0
    %439 = vmatprep.subr.mxu0 0.0
    %440 = vmatpush2.msra.mxu0 0.0
    %441 = vmatprep.subr.mxu0 0.0
    %442 = vmatpush2.msra.mxu0 0.0
    %443 = vmatprep.subr.mxu0 0.0
    %444 = vmatpush2.msra.mxu0 0.0
    %445 = vmatprep.subr.mxu0 0.0
    %446 = vmatpush2.msra.mxu0 0.0
    %447 = vmatprep.subr.mxu0 0.0
    %448 = vmatpush2.msra.mxu0 0.0
    %449 = vmatprep.subr.mxu0 0.0
    %450 = vmatpush2.msra.mxu0 0.0
    %451 = vmatprep.subr.mxu0 0.0
    %452 = vmatpush2.msra.mxu0 0.0
    %453 = vmatprep.subr.mxu0 0.0
    %454 = vmatpush2.msra.mxu0 0.0
    %455 = vmatprep.subr.mxu0 0.0
    %456 = vmatpush2.msra.mxu0 0.0
    %457 = vmatprep.mubr.f32.mxu0 0.0
    %458 = vmatmul.mubr.f32.gmra.mxu0 %v352
    %v459 = vpop.f32.mrf.mxu0
    %v460 = vadd.f32 0.0, %v459
    %v461 = vpop.f32.mrf.mxu0
    %462 = vdwg.mxu0
    %v463 = vadd.f32 %v376, %v460
    %464 = vst [vmem:[%s7] sm:$0x1] %v463
    // Predicated region
    $region58: #{_rollout_call.1} parent=1 // pred_check
      _
    $region59: #{_rollout_call.1} parent=1 // pred_check_branch
      %466 = sbr.rel (0) target = $region61
    $region60: #{_rollout_call.1} parent=1 // pred_region
      _
    $region61: #{_rollout_call.1} parent=1 // pred_fallthru
      _
    // Predicated region
    $region62: #{_rollout_call.1} parent=1 // pred_check
      _
    $region63: #{_rollout_call.1} parent=1 // pred_check_branch
      %468 = sbr.rel (0) target = $region65
    $region64: #{_rollout_call.1} parent=1 // pred_region
      %s470 = ssub.s32 16, 16
      %471 = vsyncadd [#allocation5], %s470
      %s473 = sshll.u32 [#allocation15], 4
      %s474 = int_to_ptr.vmem [resolvable:$true] %s473
      %476 = dma.vmem_to_hbm [thread:$0]  %s474, 16, %s8, [#allocation5]
    $region65: #{_rollout_call.1} parent=1 // pred_fallthru
      _
    // Predicated region
    $region66: #{_rollout_call.1} parent=1 // pred_check
      _
    $region67: #{_rollout_call.1} parent=1 // pred_check_branch
      %478 = sbr.rel (0) target = $region69
    $region68: #{_rollout_call.1} parent=1 // pred_region
      _
    $region69: #{_rollout_call.1} parent=1 // pred_fallthru
      _
    // Predicated region
    $region70: #{_rollout_call.1} parent=1 // pred_check
      _
    $region71: #{_rollout_call.1} parent=1 // pred_check_branch
      %480 = sbr.rel (0) target = $region73
    $region72: #{_rollout_call.1} parent=1 // pred_region
      %481 = dma.done [#allocation5], 16
    $region73: #{_rollout_call.1} parent=1 // pred_fallthru
      _
    %482 = vsyncpa [#allocation4], 1
    %483 = vsyncpa [#allocation11], 1
    %484 = vsyncpa [#allocation14], 1
    %485 = vsyncpa [#allocation5], 1
    %486 = vsyncpa [#allocation6], 1
    %487 = vsyncpa [#allocation7], 1

</llo_original>
